<compile_context>
chip_gen: v7x
topology: tpu7x:2x2x1
jax: 0.10.0
libtpu: 0.0.40
codegen_flags: <defaults>
</compile_context>

<pallas_src>
import math

import jax
import jax.numpy as jnp
from jax import lax
from jax.experimental import pallas as pl
from jax.experimental.pallas import tpu as pltpu


NEG_SLOPE = 0.01   # nn.LeakyReLU() default negative_slope
FEAT_EPS = 1e-6    # Feature eps


def _round_up(a, m):
    return (a + m - 1) // m * m


# ---------------------------------------------------------------------------
# Fused Pallas kernel: LeakyReLU'd padded input -> 3x3 Equal_Conv2d -> Feature
# (instance stats + style affine), with the style FCs computed in-kernel too.
# ---------------------------------------------------------------------------

def _make_rgb_kernel(C, H, W, Sz, Win):
    Hp, Wp = H + 2, W + 2
    LP = H * Wp                       # meaningful output length (padded width)
    LPpad = _round_up(LP, 128)        # lane-dense store width
    n = float(H * W)

    def kernel(x_ref, z_ref, w27_ref, bc_ref, wfc_ref, bfc_ref, o_ref):
        # x_ref  : (1, C, Win)   bf16 LeakyReLU'd, reflection-padded, row-major
        #                        flattened activation, zero-padded to Win lanes.
        # z_ref  : (1, C, Sz)    f32 flattened style input.
        # w27_ref: (27, C)       bf16 conv weights, row = 3*tap + out_channel.
        # bc_ref : (3, 1)        f32 conv bias.
        # wfc_ref: (6, C)        f32 [fc1_w; fc2_w] (Equal scaled).
        # bfc_ref: (6, 1)        f32 [fc1_b; fc2_b].
        # o_ref  : (1, 3, LPpad) f32 styled conv output, padded-width layout.

        # ---- style branch: pool(z) -> fc1/fc2 -> LeakyReLU ------------------
        # linear(mean_s z) == mean_s(linear(z)) so one matmul + lane reduce.
        sz = jnp.dot(wfc_ref[...], z_ref[0],
                     preferred_element_type=jnp.float32)            # (6, Sz)
        v = jnp.mean(sz, axis=1, keepdims=True) + bfc_ref[...]       # (6, 1)
        v = jnp.where(v >= 0.0, v, NEG_SLOPE * v)
        st_mean = v[0:3]                                             # fc1 -> mean
        st_std = v[3:6]                                              # fc2 -> std

        # ---- 3x3 conv: one packed (27,C)@(C,Win) MXU matmul -----------------
        m = jnp.dot(w27_ref[...], x_ref[0],
                    preferred_element_type=jnp.float32)              # (27, Win)
        acc = jnp.zeros((3, LPpad), jnp.float32)
        for t in range(9):
            dy, dx = divmod(t, 3)
            shift = dy * Wp + dx
            # For every VALID output column q = r*Wp + c (r<H, c<W) the tap
            # reads q + shift <= Hp*Wp - 1, i.e. always inside the real padded
            # data; the zero tail beyond Hp*Wp only feeds columns that are
            # masked out of the stats and cropped from the output.
            acc = acc + m[3 * t:3 * t + 3, shift:shift + LPpad]
        y = acc + bc_ref[...]                                        # (3, LPpad)

        # ---- Feature: per-channel masked stats (single pass) + style affine -
        q = lax.broadcasted_iota(jnp.int32, (1, LPpad), 1)
        mask = jnp.logical_and(q < LP, (q % Wp) < W).astype(jnp.float32)
        s1 = jnp.sum(y * mask, axis=1, keepdims=True)
        s2 = jnp.sum(y * y * mask, axis=1, keepdims=True)
        mean = s1 * (1.0 / n)
        var = (s2 - n * mean * mean) * (1.0 / (n - 1.0))   # torch.std unbiased
        std = jnp.sqrt(jnp.maximum(var, 0.0)) + FEAT_EPS
        scale = st_std * pl.reciprocal(std, approx=True)   # EUP slot
        bias = st_mean - mean * scale
        o_ref[0] = y * scale + bias

    return kernel


# ---------------------------------------------------------------------------
# Plain-JAX glue (layout plumbing + tiny 3-channel upsample)
# ---------------------------------------------------------------------------

def _upsample2x_along(x, axis):
    n = x.shape[axis]
    idx = jnp.arange(n)
    left = jnp.take(x, jnp.maximum(idx - 1, 0), axis=axis)
    right = jnp.take(x, jnp.minimum(idx + 1, n - 1), axis=axis)
    even = 0.25 * left + 0.75 * x
    odd = 0.75 * x + 0.25 * right
    stacked = jnp.stack([even, odd], axis=axis + 1)
    new_shape = list(x.shape)
    new_shape[axis] = 2 * n
    return stacked.reshape(new_shape)


def upsample_bilinear_2x(x):
    # nn.Upsample(scale_factor=2, mode='bilinear', align_corners=False)
    return _upsample2x_along(_upsample2x_along(x, 2), 3)


# ---------------------------------------------------------------------------
# RGBBlock forward
# ---------------------------------------------------------------------------

def rgb_block_forward(params, x, z, prev_rgb=None):
    x = x.astype(jnp.float32)
    z = z.astype(jnp.float32)
    B, C, H, W = x.shape
    Bz, Cz, Hz, Wz = z.shape
    assert B == Bz and Cz == C

    Hp, Wp = H + 2, W + 2
    LP = H * Wp
    LPpad = _round_up(LP, 128)
    Win = _round_up(2 * Wp + 2 + LPpad, 128)   # max tap shift + padded out width
    Sz = Hz * Wz

    # LeakyReLU fused into the XLA reflection-pad/flatten pass (one HBM pass
    # over the activation), zero-pad lanes to Win, cast to bf16 for the MXU.
    xa = jnp.where(x >= 0.0, x, NEG_SLOPE * x)
    xp = jnp.pad(xa, ((0, 0), (0, 0), (1, 1), (1, 1)), mode="reflect")
    xf = jnp.pad(xp.reshape(B, C, Hp * Wp), ((0, 0), (0, 0), (0, Win - Hp * Wp)))
    xf = xf.astype(jnp.bfloat16)

    zf = z.reshape(B, C, Sz)

    conv_scale = 1.0 / math.sqrt(C * 9)
    w27 = jnp.transpose(params["conv_w"] * conv_scale, (2, 3, 0, 1)).reshape(27, C)
    w27 = w27.astype(jnp.bfloat16)
    b_conv = params["conv_b"].reshape(3, 1).astype(jnp.float32)

    fc_scale = 1.0 / math.sqrt(C)
    w_fc = jnp.concatenate([params["fc1_w"], params["fc2_w"]], axis=0) * fc_scale  # (6, C)
    b_fc = jnp.concatenate([params["fc1_b"], params["fc2_b"]]).reshape(6, 1)

    kernel = _make_rgb_kernel(C, H, W, Sz, Win)

    # TODO(synk): for very large C*H*W (v7x 64 MiB VMEM) add a row-block grid
    # axis with a 2-row halo (and/or fold batches along lanes for v5e);
    # unnecessary at these block sizes.
    out_flat = pl.pallas_call(
        kernel,
        out_shape=jax.ShapeDtypeStruct((B, 3, LPpad), jnp.float32),
        grid=(B,),
        in_specs=[
            pl.BlockSpec((1, C, Win), lambda b: (b, 0, 0)),
            pl.BlockSpec((1, C, Sz), lambda b: (b, 0, 0)),
            pl.BlockSpec((27, C), lambda b: (0, 0)),
            pl.BlockSpec((3, 1), lambda b: (0, 0)),
            pl.BlockSpec((6, C), lambda b: (0, 0)),
            pl.BlockSpec((6, 1), lambda b: (0, 0)),
        ],
        out_specs=pl.BlockSpec((1, 3, LPpad), lambda b: (b, 0, 0)),
        compiler_params=pltpu.CompilerParams(
            dimension_semantics=("parallel",),
            vmem_limit_bytes=32 * 1024 * 1024,
        ),
    )(xf, zf, w27, b_conv, w_fc, b_fc)

    out = out_flat[:, :, :LP].reshape(B, 3, H, Wp)[:, :, :, :W]

    if prev_rgb is not None:
        # TODO(synk): bilinear 2x upsample + residual add kept in XLA (3-channel, tiny).
        out = out + upsample_bilinear_2x(prev_rgb.astype(jnp.float32))
    return out


# ---------------------------------------------------------------------------
# Pure-JAX reference (mirrors the PyTorch module) and parameter init
# ---------------------------------------------------------------------------

def rgb_block_reference(params, x, z, prev_rgb=None):
    x = x.astype(jnp.float32)
    z = z.astype(jnp.float32)
    B, C, H, W = x.shape
    out = jnp.where(x >= 0.0, x, NEG_SLOPE * x)
    outp = jnp.pad(out, ((0, 0), (0, 0), (1, 1), (1, 1)), mode="reflect")
    w = params["conv_w"] * (1.0 / math.sqrt(C * 9))
    y = lax.conv_general_dilated(
        outp, w, window_strides=(1, 1), padding="VALID",
        dimension_numbers=("NCHW", "OIHW", "NCHW"),
        precision=lax.Precision.HIGHEST)
    y = y + params["conv_b"].reshape(1, 3, 1, 1)
    yf = y.reshape(B, 3, H * W)

    pooled = z.mean(axis=(2, 3))
    fc_scale = 1.0 / math.sqrt(C)
    m = jnp.dot(pooled, params["fc1_w"].T * fc_scale,
                precision=lax.Precision.HIGHEST) + params["fc1_b"]
    m = jnp.where(m >= 0.0, m, NEG_SLOPE * m)
    s = jnp.dot(pooled, params["fc2_w"].T * fc_scale,
                precision=lax.Precision.HIGHEST) + params["fc2_b"]
    s = jnp.where(s >= 0.0, s, NEG_SLOPE * s)

    mean_feat = yf.mean(axis=2, keepdims=True)
    std_feat = jnp.std(yf, axis=2, ddof=1, keepdims=True) + FEAT_EPS
    new = s[:, :, None] * (yf - mean_feat) / std_feat + m[:, :, None]
    new = new.reshape(B, 3, H, W)
    if prev_rgb is not None:
        new = new + upsample_bilinear_2x(prev_rgb.astype(jnp.float32))
    return new


def init_params(in_channel, key):
    k1, k2, k3 = jax.random.split(key, 3)
    return {
        "conv_w": jax.random.normal(k1, (3, in_channel, 3, 3), jnp.float32),
        "conv_b": jnp.zeros((3,), jnp.float32),       # Equal_Conv2d bias init
        "fc1_w": jax.random.normal(k2, (3, in_channel), jnp.float32),
        "fc1_b": jnp.zeros((3,), jnp.float32),
        "fc2_w": jax.random.normal(k3, (3, in_channel), jnp.float32),
        "fc2_b": jnp.zeros((3,), jnp.float32),
    }


# ---------------------------------------------------------------------------

if __name__ == "__main__":
    key = jax.random.PRNGKey(0)
    kx, kz, kp, kparam = jax.random.split(key, 4)

    B, C, H, W = 2, 32, 16, 16
    x = jax.random.normal(kx, (B, C, H, W), dtype=jnp.float32)
    z = jax.random.normal(kz, (B, C, H, W), dtype=jnp.float32)
    prev_rgb = jax.random.normal(kp, (B, 3, H // 2, W // 2), dtype=jnp.float32)

    params = init_params(C, kparam)

    fwd = jax.jit(rgb_block_forward)
    out = jax.block_until_ready(fwd(params, x, z, prev_rgb))

    assert out.shape == (B, 3, H, W), out.shape
    assert bool(jnp.all(jnp.isfinite(out)))

    ref = rgb_block_reference(params, x, z, prev_rgb)
    err = float(jnp.max(jnp.abs(out - ref)))
    assert err < 2e-2, f"max abs error vs reference: {err}"

    print("KERNEL_OK")
</pallas_src>

<mosaic_0001>
module attributes {stable_mosaic.version = 11 : i64} {
  func.func @kernel(%arg0: i32, %arg1: memref<1x32x512xbf16, #tpu.memory_space<vmem>>, %arg2: memref<1x32x256xf32, #tpu.memory_space<vmem>>, %arg3: memref<27x32xbf16, #tpu.memory_space<vmem>>, %arg4: memref<3x1xf32, #tpu.memory_space<vmem>>, %arg5: memref<6x32xf32, #tpu.memory_space<vmem>>, %arg6: memref<6x1xf32, #tpu.memory_space<vmem>>, %arg7: memref<1x3x384xf32, #tpu.memory_space<vmem>>) attributes {dimension_semantics = [#tpu.dimension_semantics<parallel>], iteration_bounds = array<i64: 2>, scalar_prefetch = 0 : i64, scratch_operands = 0 : i64, tpu.core_type = #tpu.core_type<tc>, window_params = [{transform_indices = @transform_0, window_bounds = array<i64: 1, 32, 512>}, {transform_indices = @transform_1, window_bounds = array<i64: 1, 32, 256>}, {pipeline_mode = #tpu.pipeline_mode<synchronous>, transform_indices = @transform_2, window_bounds = array<i64: 27, 32>}, {pipeline_mode = #tpu.pipeline_mode<synchronous>, transform_indices = @transform_3, window_bounds = array<i64: 3, 1>}, {pipeline_mode = #tpu.pipeline_mode<synchronous>, transform_indices = @transform_4, window_bounds = array<i64: 6, 32>}, {pipeline_mode = #tpu.pipeline_mode<synchronous>, transform_indices = @transform_5, window_bounds = array<i64: 6, 1>}, {transform_indices = @transform_6, window_bounds = array<i64: 1, 3, 384>}]} {
    %c0 = arith.constant 0 : index
    %c0_0 = arith.constant 0 : index
    %0 = vector.load %arg5[%c0, %c0_0] : memref<6x32xf32, #tpu.memory_space<vmem>>, vector<6x32xf32>
    %c0_1 = arith.constant 0 : index
    %c0_2 = arith.constant 0 : index
    %c0_3 = arith.constant 0 : index
    %1 = vector.load %arg2[%c0_1, %c0_2, %c0_3] : memref<1x32x256xf32, #tpu.memory_space<vmem>>, vector<1x32x256xf32>
    %2 = vector.shape_cast %1 : vector<1x32x256xf32> to vector<32x256xf32>
    %cst = arith.constant dense<0.000000e+00> : vector<6x256xf32>
    %3 = tpu.matmul %0, %2, %cst {dimension_numbers = #tpu.dot_dimension_numbers<[1], [0], [0], [1], [0, 0, 1, 1], [], []>} : vector<6x32xf32>, vector<32x256xf32>, vector<6x256xf32> -> vector<6x256xf32>
    %cst_4 = arith.constant dense<0.000000e+00> : vector<6xf32>
    %4 = vector.multi_reduction <add>, %3, %cst_4 [1] : vector<6x256xf32> to vector<6xf32>
    %5 = vector.shape_cast %4 : vector<6xf32> to vector<6x1xf32>
    %cst_5 = arith.constant 2.560000e+02 : f32
    %6 = vector.broadcast %cst_5 : f32 to vector<6x1xf32>
    %7 = arith.divf %5, %6 : vector<6x1xf32>
    %c0_6 = arith.constant 0 : index
    %c0_7 = arith.constant 0 : index
    %8 = vector.load %arg6[%c0_6, %c0_7] : memref<6x1xf32, #tpu.memory_space<vmem>>, vector<6x1xf32>
    %9 = arith.addf %7, %8 : vector<6x1xf32>
    %cst_8 = arith.constant 0.000000e+00 : f32
    %10 = vector.broadcast %cst_8 : f32 to vector<6x1xf32>
    %11 = arith.cmpf oge, %9, %10 : vector<6x1xf32>
    %cst_9 = arith.constant 0.00999999977 : f32
    %12 = vector.broadcast %cst_9 : f32 to vector<6x1xf32>
    %13 = arith.mulf %12, %9 : vector<6x1xf32>
    %14 = arith.select %11, %9, %13 : vector<6x1xi1>, vector<6x1xf32>
    %15 = vector.extract_strided_slice %14 {offsets = [0, 0], sizes = [3, 1], strides = [1, 1]} : vector<6x1xf32> to vector<3x1xf32>
    %16 = vector.extract_strided_slice %14 {offsets = [3, 0], sizes = [3, 1], strides = [1, 1]} : vector<6x1xf32> to vector<3x1xf32>
    %c0_10 = arith.constant 0 : index
    %c0_11 = arith.constant 0 : index
    %17 = vector.load %arg3[%c0_10, %c0_11] : memref<27x32xbf16, #tpu.memory_space<vmem>>, vector<27x32xbf16>
    %c0_12 = arith.constant 0 : index
    %c0_13 = arith.constant 0 : index
    %c0_14 = arith.constant 0 : index
    %18 = vector.load %arg1[%c0_12, %c0_13, %c0_14] : memref<1x32x512xbf16, #tpu.memory_space<vmem>>, vector<1x32x512xbf16>
    %19 = vector.shape_cast %18 : vector<1x32x512xbf16> to vector<32x512xbf16>
    %cst_15 = arith.constant dense<0.000000e+00> : vector<27x512xf32>
    %20 = tpu.matmul %17, %19, %cst_15 {dimension_numbers = #tpu.dot_dimension_numbers<[1], [0], [0], [1], [0, 0, 1, 1], [], []>} : vector<27x32xbf16>, vector<32x512xbf16>, vector<27x512xf32> -> vector<27x512xf32>
    %cst_16 = arith.constant 0.000000e+00 : f32
    %21 = vector.broadcast %cst_16 : f32 to vector<3x384xf32>
    %22 = vector.extract_strided_slice %20 {offsets = [0, 0], sizes = [3, 384], strides = [1, 1]} : vector<27x512xf32> to vector<3x384xf32>
    %23 = arith.addf %21, %22 : vector<3x384xf32>
    %24 = vector.extract_strided_slice %20 {offsets = [3, 1], sizes = [3, 384], strides = [1, 1]} : vector<27x512xf32> to vector<3x384xf32>
    %25 = arith.addf %23, %24 : vector<3x384xf32>
    %26 = vector.extract_strided_slice %20 {offsets = [6, 2], sizes = [3, 384], strides = [1, 1]} : vector<27x512xf32> to vector<3x384xf32>
    %27 = arith.addf %25, %26 : vector<3x384xf32>
    %28 = vector.extract_strided_slice %20 {offsets = [9, 18], sizes = [3, 384], strides = [1, 1]} : vector<27x512xf32> to vector<3x384xf32>
    %29 = arith.addf %27, %28 : vector<3x384xf32>
    %30 = vector.extract_strided_slice %20 {offsets = [12, 19], sizes = [3, 384], strides = [1, 1]} : vector<27x512xf32> to vector<3x384xf32>
    %31 = arith.addf %29, %30 : vector<3x384xf32>
    %32 = vector.extract_strided_slice %20 {offsets = [15, 20], sizes = [3, 384], strides = [1, 1]} : vector<27x512xf32> to vector<3x384xf32>
    %33 = arith.addf %31, %32 : vector<3x384xf32>
    %34 = vector.extract_strided_slice %20 {offsets = [18, 36], sizes = [3, 384], strides = [1, 1]} : vector<27x512xf32> to vector<3x384xf32>
    %35 = arith.addf %33, %34 : vector<3x384xf32>
    %36 = vector.extract_strided_slice %20 {offsets = [21, 37], sizes = [3, 384], strides = [1, 1]} : vector<27x512xf32> to vector<3x384xf32>
    %37 = arith.addf %35, %36 : vector<3x384xf32>
    %38 = vector.extract_strided_slice %20 {offsets = [24, 38], sizes = [3, 384], strides = [1, 1]} : vector<27x512xf32> to vector<3x384xf32>
    %39 = arith.addf %37, %38 : vector<3x384xf32>
    %c0_17 = arith.constant 0 : index
    %c0_18 = arith.constant 0 : index
    %40 = vector.load %arg4[%c0_17, %c0_18] : memref<3x1xf32, #tpu.memory_space<vmem>>, vector<3x1xf32>
    %41 = vector.broadcast %40 : vector<3x1xf32> to vector<3x384xf32>
    %42 = arith.addf %39, %41 : vector<3x384xf32>
    %43 = tpu.iota {dimensions = array<i32: 1>} : vector<1x384xi32>
    %c288_i32 = arith.constant 288 : i32
    %44 = vector.broadcast %c288_i32 : i32 to vector<1x384xi32>
    %45 = arith.cmpi slt, %43, %44 : vector<1x384xi32>
    %c18_i32 = arith.constant 18 : i32
    %c0_i32 = arith.constant 0 : i32
    %46 = arith.cmpi eq, %c18_i32, %c0_i32 : i32
    %c1_i32 = arith.constant 1 : i32
    %47 = arith.select %46, %c1_i32, %c18_i32 : i32
    %48 = vector.broadcast %47 : i32 to vector<1x384xi32>
    %49 = arith.remsi %43, %48 : vector<1x384xi32>
    %c0_i32_19 = arith.constant 0 : i32
    %50 = vector.broadcast %c0_i32_19 : i32 to vector<1x384xi32>
    %51 = arith.cmpi ne, %49, %50 : vector<1x384xi32>
    %c0_i32_20 = arith.constant 0 : i32
    %52 = vector.broadcast %c0_i32_20 : i32 to vector<1x384xi32>
    %53 = arith.cmpi slt, %49, %52 : vector<1x384xi32>
    %c0_i32_21 = arith.constant 0 : i32
    %54 = arith.cmpi slt, %47, %c0_i32_21 : i32
    %55 = vector.broadcast %54 : i1 to vector<1x384xi1>
    %56 = vector.broadcast %55 : vector<1x384xi1> to vector<1x384xi1>
    %57 = arith.xori %53, %56 : vector<1x384xi1>
    %58 = arith.andi %57, %51 : vector<1x384xi1>
    %59 = vector.broadcast %47 : i32 to vector<1x384xi32>
    %60 = arith.addi %49, %59 : vector<1x384xi32>
    %61 = arith.select %58, %60, %49 : vector<1x384xi1>, vector<1x384xi32>
    %c16_i32 = arith.constant 16 : i32
    %62 = vector.broadcast %c16_i32 : i32 to vector<1x384xi32>
    %63 = arith.cmpi slt, %61, %62 : vector<1x384xi32>
    %64 = arith.andi %45, %63 : vector<1x384xi1>
    %65 = arith.extui %64 : vector<1x384xi1> to vector<1x384xi32>
    %66 = arith.sitofp %65 : vector<1x384xi32> to vector<1x384xf32>
    %67 = vector.broadcast %66 : vector<1x384xf32> to vector<3x384xf32>
    %68 = arith.mulf %42, %67 : vector<3x384xf32>
    %cst_22 = arith.constant dense<0.000000e+00> : vector<3xf32>
    %69 = vector.multi_reduction <add>, %68, %cst_22 [1] : vector<3x384xf32> to vector<3xf32>
    %70 = vector.shape_cast %69 : vector<3xf32> to vector<3x1xf32>
    %71 = arith.mulf %42, %42 : vector<3x384xf32>
    %72 = vector.broadcast %66 : vector<1x384xf32> to vector<3x384xf32>
    %73 = arith.mulf %71, %72 : vector<3x384xf32>
    %cst_23 = arith.constant dense<0.000000e+00> : vector<3xf32>
    %74 = vector.multi_reduction <add>, %73, %cst_23 [1] : vector<3x384xf32> to vector<3xf32>
    %75 = vector.shape_cast %74 : vector<3xf32> to vector<3x1xf32>
    %cst_24 = arith.constant 3.906250e-03 : f32
    %76 = vector.broadcast %cst_24 : f32 to vector<3x1xf32>
    %77 = arith.mulf %70, %76 : vector<3x1xf32>
    %cst_25 = arith.constant 2.560000e+02 : f32
    %78 = vector.broadcast %cst_25 : f32 to vector<3x1xf32>
    %79 = arith.mulf %78, %77 : vector<3x1xf32>
    %80 = arith.mulf %79, %77 : vector<3x1xf32>
    %81 = arith.subf %75, %80 : vector<3x1xf32>
    %cst_26 = arith.constant 0.00392156886 : f32
    %82 = vector.broadcast %cst_26 : f32 to vector<3x1xf32>
    %83 = arith.mulf %81, %82 : vector<3x1xf32>
    %cst_27 = arith.constant 0.000000e+00 : f32
    %84 = vector.broadcast %cst_27 : f32 to vector<3x1xf32>
    %85 = arith.maximumf %83, %84 : vector<3x1xf32>
    %86 = math.sqrt %85 : vector<3x1xf32>
    %cst_28 = arith.constant 9.99999997E-7 : f32
    %87 = vector.broadcast %cst_28 : f32 to vector<3x1xf32>
    %88 = arith.addf %86, %87 : vector<3x1xf32>
    %89 = tpu.reciprocal %88 {approx = true} : vector<3x1xf32> -> vector<3x1xf32>
    %90 = arith.mulf %16, %89 : vector<3x1xf32>
    %91 = arith.mulf %77, %90 : vector<3x1xf32>
    %92 = arith.subf %15, %91 : vector<3x1xf32>
    %93 = vector.broadcast %90 : vector<3x1xf32> to vector<3x384xf32>
    %94 = arith.mulf %42, %93 : vector<3x384xf32>
    %95 = vector.broadcast %92 : vector<3x1xf32> to vector<3x384xf32>
    %96 = arith.addf %94, %95 : vector<3x384xf32>
    %c0_29 = arith.constant 0 : index
    %c0_30 = arith.constant 0 : index
    %c0_31 = arith.constant 0 : index
    %97 = vector.load %arg7[%c0_29, %c0_30, %c0_31] : memref<1x3x384xf32, #tpu.memory_space<vmem>>, vector<1x3x384xf32>
    %98 = vector.shape_cast %97 : vector<1x3x384xf32> to vector<3x384xf32>
    %99 = vector.shape_cast %96 : vector<3x384xf32> to vector<1x3x384xf32>
    tpu.vector_store %arg7[%c0_29, %c0_30, %c0_31], %99 {strides = array<i32>} : memref<1x3x384xf32, #tpu.memory_space<vmem>>, vector<1x3x384xf32>,
    return
  }
  func.func @transform_0(%arg0: i32) -> (i32, i32, i32) {
    %c0_i32 = arith.constant 0 : i32
    %c0_i32_0 = arith.constant 0 : i32
    %c0_i32_1 = arith.constant 0 : i32
    return %arg0, %c0_i32, %c0_i32_0 : i32, i32, i32
  }
  func.func @transform_1(%arg0: i32) -> (i32, i32, i32) {
    %c0_i32 = arith.constant 0 : i32
    %c0_i32_0 = arith.constant 0 : i32
    %c0_i32_1 = arith.constant 0 : i32
    return %arg0, %c0_i32, %c0_i32_0 : i32, i32, i32
  }
  func.func @transform_2(%arg0: i32) -> (i32, i32) {
    %c0_i32 = arith.constant 0 : i32
    %c0_i32_0 = arith.constant 0 : i32
    %c0_i32_1 = arith.constant 0 : i32
    return %c0_i32, %c0_i32_0 : i32, i32
  }
  func.func @transform_3(%arg0: i32) -> (i32, i32) {
    %c0_i32 = arith.constant 0 : i32
    %c0_i32_0 = arith.constant 0 : i32
    %c0_i32_1 = arith.constant 0 : i32
    return %c0_i32, %c0_i32_0 : i32, i32
  }
  func.func @transform_4(%arg0: i32) -> (i32, i32) {
    %c0_i32 = arith.constant 0 : i32
    %c0_i32_0 = arith.constant 0 : i32
    %c0_i32_1 = arith.constant 0 : i32
    return %c0_i32, %c0_i32_0 : i32, i32
  }
  func.func @transform_5(%arg0: i32) -> (i32, i32) {
    %c0_i32 = arith.constant 0 : i32
    %c0_i32_0 = arith.constant 0 : i32
    %c0_i32_1 = arith.constant 0 : i32
    return %c0_i32, %c0_i32_0 : i32, i32
  }
  func.func @transform_6(%arg0: i32) -> (i32, i32, i32) {
    %c0_i32 = arith.constant 0 : i32
    %c0_i32_0 = arith.constant 0 : i32
    %c0_i32_1 = arith.constant 0 : i32
    return %arg0, %c0_i32, %c0_i32_0 : i32, i32, i32
  }
}

</mosaic_0001>

<llo_original>
// kernel: rgb_block_forward.1
$region0: #{rgb_block_forward.1}
  #allocation0 [shape = 'u32[]', space=smem, size = 0x4, offset = 0x4, fixed_abs, tag = 'smem constant byte address 0x4 - core index']
  #allocation1 [shape = 'u32[144,128]{1,0:T(1,128)}', space=vmem, size = 0x12000, scoped, tag = 'internal scratch']
  %s0 = inlined_call_operand.vmem [shape: bf16[2,32,512], index: 0, kind: input, shape index: {}]
  %s1 = inlined_call_operand.vmem [shape: f32[2,32,256], index: 1, kind: input, shape index: {}]
  %s2 = inlined_call_operand.vmem [shape: bf16[27,32], index: 2, kind: input, shape index: {}]
  %s3 = inlined_call_operand.vmem [shape: f32[3,1], index: 3, kind: input, shape index: {}]
  %s4 = inlined_call_operand.vmem [shape: f32[6,32], index: 4, kind: input, shape index: {}]
  %s5 = inlined_call_operand.vmem [shape: f32[6,1], index: 5, kind: input, shape index: {}]
  %s6 = inlined_call_operand.vmem [shape: f32[2,3,384], index: 6, kind: output, shape index: {}]
  %s7 = sld [smem:[#allocation0]]
  $region57: #{rgb_block_forward.1} parent=0
    _
  %s9 = ssub.s32 1, %s7
  %s10 = scalar_select 0, %s9, %s7
  loop: start=0, step=1, limit=4
  $region2: #{rgb_block_forward.1} parent=0 // loop_pre_header
    _
  $region3: #{rgb_block_forward.1} parent=0 // loop_header
    %s12 = sphi 0, %s16
    %p13 = scmp.ge.s32.totalorder %s12, 4
    %s22 = sphi 0, %s24
    %s25 = sphi 0, %s22
    %s26 = sphi 0, %s25
    %s42 = sphi 0, %s26
    %s48 = sphi 0, %s50
    %s51 = sphi 0, %s48
    %s52 = sphi 0, %s51
    %s68 = sphi 0, %s52
    %s72 = sphi 0, %s72
    %s74 = sphi 0, %s72
    %s75 = sphi 0, %s74
    %s89 = sphi 0, %s75
    %s93 = sphi 0, %s93
    %s95 = sphi 0, %s93
    %s96 = sphi 0, %s95
    %s110 = sphi 0, %s96
    %s114 = sphi 0, %s114
    %s116 = sphi 0, %s114
    %s117 = sphi 0, %s116
    %s131 = sphi 0, %s117
    %s135 = sphi 0, %s135
    %s137 = sphi 0, %s135
    %s138 = sphi 0, %s137
    %s152 = sphi 0, %s138
    %s158 = sphi 0, %s160
    %s161 = sphi 0, %s158
    %s162 = sphi 0, %s161
    %s178 = sphi 0, %s162
  $region4: #{rgb_block_forward.1} parent=0 // loop_header_branch
    %15 = sbr.rel (%p13) target = $region8
  $region5: #{rgb_block_forward.1} parent=0 // loop_body
    %s17 = ssub.s32 %s12, 1
    %s18 = ssub.s32 %s12, 2
    %s19 = sadd.s32 %s12, 1
    %s20 = ssub.s32 %s12, %s19
    %p21 = scmp.eq.s32.totalorder %s20, 0
    %s23 = sadd.s32 %s22, 1
    %s24 = scalar_select %p21, %s22, %s23
    %p27 = pneg %p21
    %p28 = scmp.eq.s32.totalorder %s12, 1
    %p29 = por %p27, %p28
    %p30 = scmp.ne.s32.totalorder %s22, %s25
    %p31 = scmp.eq.s32.totalorder %s12, 0
    %p32 = por %p30, %p31
    %p33 = scmp.ne.s32.totalorder %s22, %s25
    %p34 = scmp.eq.s32.totalorder %s17, 1
    %p35 = por %p33, %p34
    %p36 = scmp.ne.s32.totalorder %s25, %s26
    %p37 = scmp.eq.s32.totalorder %s17, 0
    %p38 = por %p36, %p37
    %p39 = scmp.ne.s32.totalorder %s25, %s26
    %p40 = scmp.eq.s32.totalorder %s18, 1
    %p41 = por %p39, %p40
    %p43 = scmp.ne.s32.totalorder %s26, %s42
    %p44 = scmp.eq.s32.totalorder %s18, 0
    %p45 = por %p43, %p44
    %s46 = ssub.s32 %s12, %s19
    %p47 = scmp.eq.s32.totalorder %s46, 0
    %s49 = sadd.s32 %s48, 1
    %s50 = scalar_select %p47, %s48, %s49
    %p53 = pneg %p47
    %p54 = scmp.eq.s32.totalorder %s12, 1
    %p55 = por %p53, %p54
    %p56 = scmp.ne.s32.totalorder %s48, %s51
    %p57 = scmp.eq.s32.totalorder %s12, 0
    %p58 = por %p56, %p57
    %p59 = scmp.ne.s32.totalorder %s48, %s51
    %p60 = scmp.eq.s32.totalorder %s17, 1
    %p61 = por %p59, %p60
    %p62 = scmp.ne.s32.totalorder %s51, %s52
    %p63 = scmp.eq.s32.totalorder %s17, 0
    %p64 = por %p62, %p63
    %p65 = scmp.ne.s32.totalorder %s51, %s52
    %p66 = scmp.eq.s32.totalorder %s18, 1
    %p67 = por %p65, %p66
    %p69 = scmp.ne.s32.totalorder %s52, %s68
    %p70 = scmp.eq.s32.totalorder %s18, 0
    %p71 = por %p69, %p70
    %s73 = sadd.s32 %s72, 1
    %p76 = scmp.eq.s32.totalorder %s12, 1
    %p77 = scmp.ne.s32.totalorder %s72, %s74
    %p78 = scmp.eq.s32.totalorder %s12, 0
    %p79 = por %p77, %p78
    %p80 = scmp.ne.s32.totalorder %s72, %s74
    %p81 = scmp.eq.s32.totalorder %s17, 1
    %p82 = por %p80, %p81
    %p83 = scmp.ne.s32.totalorder %s74, %s75
    %p84 = scmp.eq.s32.totalorder %s17, 0
    %p85 = por %p83, %p84
    %p86 = scmp.ne.s32.totalorder %s74, %s75
    %p87 = scmp.eq.s32.totalorder %s18, 1
    %p88 = por %p86, %p87
    %p90 = scmp.ne.s32.totalorder %s75, %s89
    %p91 = scmp.eq.s32.totalorder %s18, 0
    %p92 = por %p90, %p91
    %s94 = sadd.s32 %s93, 1
    %p97 = scmp.eq.s32.totalorder %s12, 1
    %p98 = scmp.ne.s32.totalorder %s93, %s95
    %p99 = scmp.eq.s32.totalorder %s12, 0
    %p100 = por %p98, %p99
    %p101 = scmp.ne.s32.totalorder %s93, %s95
    %p102 = scmp.eq.s32.totalorder %s17, 1
    %p103 = por %p101, %p102
    %p104 = scmp.ne.s32.totalorder %s95, %s96
    %p105 = scmp.eq.s32.totalorder %s17, 0
    %p106 = por %p104, %p105
    %p107 = scmp.ne.s32.totalorder %s95, %s96
    %p108 = scmp.eq.s32.totalorder %s18, 1
    %p109 = por %p107, %p108
    %p111 = scmp.ne.s32.totalorder %s96, %s110
    %p112 = scmp.eq.s32.totalorder %s18, 0
    %p113 = por %p111, %p112
    %s115 = sadd.s32 %s114, 1
    %p118 = scmp.eq.s32.totalorder %s12, 1
    %p119 = scmp.ne.s32.totalorder %s114, %s116
    %p120 = scmp.eq.s32.totalorder %s12, 0
    %p121 = por %p119, %p120
    %p122 = scmp.ne.s32.totalorder %s114, %s116
    %p123 = scmp.eq.s32.totalorder %s17, 1
    %p124 = por %p122, %p123
    %p125 = scmp.ne.s32.totalorder %s116, %s117
    %p126 = scmp.eq.s32.totalorder %s17, 0
    %p127 = por %p125, %p126
    %p128 = scmp.ne.s32.totalorder %s116, %s117
    %p129 = scmp.eq.s32.totalorder %s18, 1
    %p130 = por %p128, %p129
    %p132 = scmp.ne.s32.totalorder %s117, %s131
    %p133 = scmp.eq.s32.totalorder %s18, 0
    %p134 = por %p132, %p133
    %s136 = sadd.s32 %s135, 1
    %p139 = scmp.eq.s32.totalorder %s12, 1
    %p140 = scmp.ne.s32.totalorder %s135, %s137
    %p141 = scmp.eq.s32.totalorder %s12, 0
    %p142 = por %p140, %p141
    %p143 = scmp.ne.s32.totalorder %s135, %s137
    %p144 = scmp.eq.s32.totalorder %s17, 1
    %p145 = por %p143, %p144
    %p146 = scmp.ne.s32.totalorder %s137, %s138
    %p147 = scmp.eq.s32.totalorder %s17, 0
    %p148 = por %p146, %p147
    %p149 = scmp.ne.s32.totalorder %s137, %s138
    %p150 = scmp.eq.s32.totalorder %s18, 1
    %p151 = por %p149, %p150
    %p153 = scmp.ne.s32.totalorder %s138, %s152
    %p154 = scmp.eq.s32.totalorder %s18, 0
    %p155 = por %p153, %p154
    %s156 = ssub.s32 %s12, %s19
    %p157 = scmp.eq.s32.totalorder %s156, 0
    %s159 = sadd.s32 %s158, 1
    %s160 = scalar_select %p157, %s158, %s159
    %p163 = pneg %p157
    %p164 = scmp.eq.s32.totalorder %s12, 1
    %p165 = por %p163, %p164
    %p166 = scmp.ne.s32.totalorder %s158, %s161
    %p167 = scmp.eq.s32.totalorder %s12, 0
    %p168 = por %p166, %p167
    %p169 = scmp.ne.s32.totalorder %s158, %s161
    %p170 = scmp.eq.s32.totalorder %s17, 1
    %p171 = por %p169, %p170
    %p172 = scmp.ne.s32.totalorder %s161, %s162
    %p173 = scmp.eq.s32.totalorder %s17, 0
    %p174 = por %p172, %p173
    %p175 = scmp.ne.s32.totalorder %s161, %s162
    %p176 = scmp.eq.s32.totalorder %s18, 1
    %p177 = por %p175, %p176
    %p179 = scmp.ne.s32.totalorder %s162, %s178
    %p180 = scmp.eq.s32.totalorder %s18, 0
    %p181 = por %p179, %p180
    %p182 = scmp.le.s32.totalorder 1, %s12
    %p183 = scmp.lt.s32.totalorder %s12, 3
    %p184 = pnand %p182, %p183
    %p185 = pneg %p184
    // Predicated region
    $region9: #{rgb_block_forward.1} parent=5 // pred_check
      _
    $region10: #{rgb_block_forward.1} parent=5 // pred_check_branch
      %187 = sbr.rel (%p184) target = $region12
    $region11: #{rgb_block_forward.1} parent=5 // pred_region
      %s188 = ssub.s32 %s12, 1
      // Predicated region
      $region13: #{rgb_block_forward.1} parent=11 // pred_check
        %p189 = pneg %p85
      $region14: #{rgb_block_forward.1} parent=11 // pred_check_branch
        %191 = sbr.rel (%p189) target = $region16
      $region15: #{rgb_block_forward.1} parent=11 // pred_region
        _
      $region16: #{rgb_block_forward.1} parent=11 // pred_fallthru
        _
      // Predicated region
      $region17: #{rgb_block_forward.1} parent=11 // pred_check
        %p192 = pneg %p106
      $region18: #{rgb_block_forward.1} parent=11 // pred_check_branch
        %194 = sbr.rel (%p192) target = $region20
      $region19: #{rgb_block_forward.1} parent=11 // pred_region
        _
      $region20: #{rgb_block_forward.1} parent=11 // pred_fallthru
        _
      // Predicated region
      $region21: #{rgb_block_forward.1} parent=11 // pred_check
        %p195 = pneg %p127
      $region22: #{rgb_block_forward.1} parent=11 // pred_check_branch
        %197 = sbr.rel (%p195) target = $region24
      $region23: #{rgb_block_forward.1} parent=11 // pred_region
        _
      $region24: #{rgb_block_forward.1} parent=11 // pred_fallthru
        _
      // Predicated region
      $region25: #{rgb_block_forward.1} parent=11 // pred_check
        %p198 = pneg %p148
      $region26: #{rgb_block_forward.1} parent=11 // pred_check_branch
        %200 = sbr.rel (%p198) target = $region28
      $region27: #{rgb_block_forward.1} parent=11 // pred_region
        _
      $region28: #{rgb_block_forward.1} parent=11 // pred_fallthru
        _
    $region12: #{rgb_block_forward.1} parent=5 // pred_fallthru
      _
    %p201 = scmp.lt.s32.totalorder %s12, 2
    // Predicated region
    $region29: #{rgb_block_forward.1} parent=5 // pred_check
      %p202 = pneg %p201
    $region30: #{rgb_block_forward.1} parent=5 // pred_check_branch
      %204 = sbr.rel (%p202) target = $region32
    $region31: #{rgb_block_forward.1} parent=5 // pred_region
      // Predicated region
      $region33: #{rgb_block_forward.1} parent=31 // pred_check
        %p205 = pneg %p32
      $region34: #{rgb_block_forward.1} parent=31 // pred_check_branch
        %207 = sbr.rel (%p205) target = $region36
      $region35: #{rgb_block_forward.1} parent=31 // pred_region
        %p208 = scmp.lt.s32.totalorder %s12, 1
        %s209 = scalar_select %p208, %s12, 1
        %s210 = smul.addr %s209, 16
        %s211 = smul.addr %s210, 4
        %s212 = scalar_lea.vmem %s0, %s211
      $region36: #{rgb_block_forward.1} parent=31 // pred_fallthru
        _
      // Predicated region
      $region37: #{rgb_block_forward.1} parent=31 // pred_check
        %p213 = pneg %p58
      $region38: #{rgb_block_forward.1} parent=31 // pred_check_branch
        %215 = sbr.rel (%p213) target = $region40
      $region39: #{rgb_block_forward.1} parent=31 // pred_region
        %p216 = scmp.lt.s32.totalorder %s12, 1
        %s217 = scalar_select %p216, %s12, 1
        %s218 = smul.addr %s217, 8
        %s219 = smul.addr %s218, 8
        %s220 = scalar_lea.vmem %s1, %s219
      $region40: #{rgb_block_forward.1} parent=31 // pred_fallthru
        _
    $region32: #{rgb_block_forward.1} parent=5 // pred_fallthru
      _
    %p221 = scmp.le.s32.totalorder 1, %s12
    %p222 = scmp.lt.s32.totalorder %s12, 3
    %p223 = pnand %p221, %p222
    %p224 = pneg %p223
    // Predicated region
    $region41: #{rgb_block_forward.1} parent=5 // pred_check
      _
    $region42: #{rgb_block_forward.1} parent=5 // pred_check_branch
      %226 = sbr.rel (%p223) target = $region44
    $region43: #{rgb_block_forward.1} parent=5 // pred_region
      %s227 = ssub.s32 %s12, 1
      %p228 = scmp.lt.s32.totalorder %s17, 1
      %s229 = scalar_select %p228, %s17, 1
      %s230 = smul.addr %s229, 16
      %s231 = smul.addr %s230, 4
      %s232 = scalar_lea.vmem %s0, %s231
      %p233 = pneg %p38
      %p234 = pneg %p35
      %p235 = scmp.lt.s32.totalorder %s17, 1
      %s236 = scalar_select %p235, %s17, 1
      %s237 = smul.addr %s236, 8
      %s238 = smul.addr %s237, 8
      %s239 = scalar_lea.vmem %s1, %s238
      %p240 = pneg %p64
      %p241 = pneg %p61
      %p242 = pneg %p85
      %p243 = pneg %p82
      %p244 = pneg %p106
      %p245 = pneg %p103
      %p246 = pneg %p127
      %p247 = pneg %p124
      %p248 = pneg %p148
      %p249 = pneg %p145
      %p250 = pneg %p174
      %p251 = pneg %p171
      %p252 = scmp.lt.s32.totalorder %s17, 1
      %s253 = scalar_select %p252, %s17, 1
      %s254 = smul.addr %s253, 3
      %s255 = smul.addr %s254, 4
      %s256 = scalar_lea.vmem %s6, %s255
      %p257 = scmp.lt.s32.totalorder %s17, 1
      %s258 = scalar_select %p257, %s17, 1
      %s259 = smul.addr %s258, 16
      %s260 = smul.addr %s259, 4
      %s261 = scalar_lea.vmem %s0, %s260
      %p262 = scmp.lt.s32.totalorder %s17, 1
      %s263 = scalar_select %p262, %s17, 1
      %s264 = smul.addr %s263, 8
      %s265 = smul.addr %s264, 8
      %s266 = scalar_lea.vmem %s1, %s265
      %p267 = scmp.lt.s32.totalorder %s17, 1
      %s268 = scalar_select %p267, %s17, 1
      %s269 = smul.addr %s268, 3
      %s270 = smul.addr %s269, 4
      %s271 = scalar_lea.vmem %s6, %s270
      %v273 = vld [vmem:[%s4] sm:$0x3f]
      %v274 = vld [vmem:[%s266] sm:$0xff]
      %v275 = vld [vmem:[%s266 + $0x8] sm:$0xff]
      %v276 = vld [vmem:[%s266 + $0x10] sm:$0xff]
      %v277 = vld [vmem:[%s266 + $0x18] sm:$0xff]
      %v278 = vld [vmem:[%s266 + $0x20] sm:$0xff]
      %v279 = vld [vmem:[%s266 + $0x28] sm:$0xff]
      %v280 = vld [vmem:[%s266 + $0x30] sm:$0xff]
      %v281 = vld [vmem:[%s266 + $0x38] sm:$0xff]
      %vm282 = vcmask 261120
      %v284 = vsel %vm282, %v273, 0
      %286 = vmatprep.subr.mxu0 %v275
      %287 = vmatpush1.msra.mxu0 %v274
      %288 = vmatprep.subr.mxu0 %v277
      %289 = vmatpush1.msra.mxu0 %v276
      %290 = vmatprep.subr.mxu0 %v279
      %291 = vmatpush1.msra.mxu0 %v278
      %292 = vmatprep.subr.mxu0 %v281
      %293 = vmatpush1.msra.mxu0 %v280
      %294 = vmatprep.subr.mxu0 0.0
      %295 = vmatpush1.msra.mxu0 0.0
      %296 = vmatprep.subr.mxu0 0.0
      %297 = vmatpush1.msra.mxu0 0.0
      %298 = vmatprep.subr.mxu0 0.0
      %299 = vmatpush1.msra.mxu0 0.0
      %300 = vmatprep.subr.mxu0 0.0
      %301 = vmatpush1.msra.mxu0 0.0
      %302 = vmatprep.subr.mxu0 0.0
      %303 = vmatpush1.msra.mxu0 0.0
      %304 = vmatprep.subr.mxu0 0.0
      %305 = vmatpush1.msra.mxu0 0.0
      %306 = vmatprep.subr.mxu0 0.0
      %307 = vmatpush1.msra.mxu0 0.0
      %308 = vmatprep.subr.mxu0 0.0
      %309 = vmatpush1.msra.mxu0 0.0
      %310 = vmatprep.subr.mxu0 0.0
      %311 = vmatpush1.msra.mxu0 0.0
      %312 = vmatprep.subr.mxu0 0.0
      %313 = vmatpush1.msra.mxu0 0.0
      %314 = vmatprep.subr.mxu0 0.0
      %315 = vmatpush1.msra.mxu0 0.0
      %316 = vmatprep.subr.mxu0 0.0
      %317 = vmatpush1.msra.mxu0 0.0
      %318 = vmatprep.subr.mxu0 0.0
      %319 = vmatpush1.msra.mxu0 0.0
      %320 = vmatprep.subr.mxu0 0.0
      %321 = vmatpush1.msra.mxu0 0.0
      %322 = vmatprep.subr.mxu0 0.0
      %323 = vmatpush1.msra.mxu0 0.0
      %324 = vmatprep.subr.mxu0 0.0
      %325 = vmatpush1.msra.mxu0 0.0
      %326 = vmatprep.subr.mxu0 0.0
      %327 = vmatpush1.msra.mxu0 0.0
      %328 = vmatprep.subr.mxu0 0.0
      %329 = vmatpush1.msra.mxu0 0.0
      %330 = vmatprep.subr.mxu0 0.0
      %331 = vmatpush1.msra.mxu0 0.0
      %332 = vmatprep.subr.mxu0 0.0
      %333 = vmatpush1.msra.mxu0 0.0
      %334 = vmatprep.subr.mxu0 0.0
      %335 = vmatpush1.msra.mxu0 0.0
      %336 = vmatprep.subr.mxu0 0.0
      %337 = vmatpush1.msra.mxu0 0.0
      %338 = vmatprep.subr.mxu0 0.0
      %339 = vmatpush1.msra.mxu0 0.0
      %340 = vmatprep.subr.mxu0 0.0
      %341 = vmatpush1.msra.mxu0 0.0
      %342 = vmatprep.subr.mxu0 0.0
      %343 = vmatpush1.msra.mxu0 0.0
      %344 = vmatprep.subr.mxu0 0.0
      %345 = vmatpush1.msra.mxu0 0.0
      %346 = vmatprep.subr.mxu0 0.0
      %347 = vmatpush1.msra.mxu0 0.0
      %348 = vmatprep.subr.mxu0 0.0
      %349 = vmatpush1.msra.mxu0 0.0
      %350 = vmatprep.mubr.f32.mxu0 0.0
      %351 = vmatmul.mubr.f32.gmra.mrb[0].mxu0 %v284
      %v352 = vpop.f32.mrb[0].mxu0
      %v353 = vadd.f32 0.0, %v352
      %v354 = vpop.f32.mrb[0].mxu0
      %v355 = vadd.f32 0.0, %v354
      %356 = vdwg.mxu0
      %vm357 = vcmask 1045504
      %v358 = vsel %vm357, %v353, 0.0
      %v359 = vsel %vm357, %v355, 0.0
      %v360 = vadd.f32 %v358, %v359
      %361 = vadd.xlane.f32.xlu0 %v360
      %v362 = vpop.xlane.xlu0 %361
      %v363 = vrcp.pop 256.0
      %v364 = vmul.f32 %v362, %v363
      %v365 = vld [vmem:[%s5] sm:$0x3f]
      %v366 = vadd.f32 %v364, %v365
      %vm367 = vcmp.ge.f32.partialorder %v366, 0.0
      %v368 = vmul.f32 %v366, 0.01
      %v369 = vsel %vm367, %v366, %v368
      %v370 = vld [vmem:[%s2] sm:$0xf]
      %v371 = vld [vmem:[%s2 + $0x4] sm:$0xf]
      %v372 = vld [vmem:[%s2 + $0x8] sm:$0xf]
      %v373 = vld [vmem:[%s2 + $0xc] sm:$0x3]
      %v374 = vld [vmem:[%s261] sm:$0xff]
      %v375 = vld [vmem:[%s261 + $0x8] sm:$0xff]
      %v376 = vld [vmem:[%s261 + $0x10] sm:$0xff]
      %v377 = vld [vmem:[%s261 + $0x18] sm:$0xff]
      %v378 = vld [vmem:[%s261 + $0x20] sm:$0xff]
      %v379 = vld [vmem:[%s261 + $0x28] sm:$0xff]
      %v380 = vld [vmem:[%s261 + $0x30] sm:$0xff]
      %v381 = vld [vmem:[%s261 + $0x38] sm:$0xff]
      %v386 = vunpack.c.l.b16 %v370
      %v387 = vunpack.c.l.b16 %v371
      %v388 = vunpack.c.l.b16 %v372
      %v389 = vunpack.c.l.b16 %v373
      %v390 = vpack.c.b16 %v387, %v386
      %v391 = vpack.c.b16 %v389, %v388
      %v400 = vunpack.c.l.b16 %v374
      %v401 = vunpack.c.h.b16 %v374
      %v402 = vunpack.c.l.b16 %v375
      %v403 = vunpack.c.h.b16 %v375
      %v404 = vunpack.c.l.b16 %v376
      %v405 = vunpack.c.h.b16 %v376
      %v406 = vunpack.c.l.b16 %v377
      %v407 = vunpack.c.h.b16 %v377
      %v408 = vunpack.c.l.b16 %v378
      %v409 = vunpack.c.h.b16 %v378
      %v410 = vunpack.c.l.b16 %v379
      %v411 = vunpack.c.h.b16 %v379
      %v412 = vunpack.c.l.b16 %v380
      %v413 = vunpack.c.h.b16 %v380
      %v414 = vunpack.c.l.b16 %v381
      %v415 = vunpack.c.h.b16 %v381
      %v416 = vpack.c.b16 %v404, %v400
      %v417 = vpack.c.b16 %v405, %v401
      %v418 = vpack.c.b16 %v406, %v402
      %v419 = vpack.c.b16 %v407, %v403
      %v420 = vpack.c.b16 %v412, %v408
      %v421 = vpack.c.b16 %v413, %v409
      %v422 = vpack.c.b16 %v414, %v410
      %v423 = vpack.c.b16 %v415, %v411
      %v433 = vsel %vm282, %v390, 0
      %v436 = vsel %vm282, %v391, 0
      %438 = vmatprep.subr.bf16.mxu0 %v417
      %439 = vmatpush1.bf16.msra.mxu0 %v416
      %440 = vmatprep.subr.bf16.mxu0 %v421
      %441 = vmatpush1.bf16.msra.mxu0 %v420
      %442 = vmatprep.subr.bf16.mxu0 0
      %443 = vmatpush1.bf16.msra.mxu0 0
      %444 = vmatprep.subr.bf16.mxu0 0
      %445 = vmatpush1.bf16.msra.mxu0 0
      %446 = vmatprep.subr.bf16.mxu0 0
      %447 = vmatpush1.bf16.msra.mxu0 0
      %448 = vmatprep.subr.bf16.mxu0 0
      %449 = vmatpush1.bf16.msra.mxu0 0
      %450 = vmatprep.subr.bf16.mxu0 0
      %451 = vmatpush1.bf16.msra.mxu0 0
      %452 = vmatprep.subr.bf16.mxu0 0
      %453 = vmatpush1.bf16.msra.mxu0 0
      %454 = vmatprep.subr.bf16.mxu0 0
      %455 = vmatpush1.bf16.msra.mxu0 0
      %456 = vmatprep.subr.bf16.mxu0 0
      %457 = vmatpush1.bf16.msra.mxu0 0
      %458 = vmatprep.subr.bf16.mxu0 0
      %459 = vmatpush1.bf16.msra.mxu0 0
      %460 = vmatprep.subr.bf16.mxu0 0
      %461 = vmatpush1.bf16.msra.mxu0 0
      %462 = vmatprep.subr.bf16.mxu0 0
      %463 = vmatpush1.bf16.msra.mxu0 0
      %464 = vmatprep.subr.bf16.mxu0 0
      %465 = vmatpush1.bf16.msra.mxu0 0
      %466 = vmatprep.subr.bf16.mxu0 0
      %467 = vmatpush1.bf16.msra.mxu0 0
      %468 = vmatprep.subr.bf16.mxu0 0
      %469 = vmatpush1.bf16.msra.mxu0 0
      %470 = vmatprep.mubr.bf16.mxu0 0
      %471 = vmatmul.mubr.bf16.gmra.mrb[0].mxu0 %v433
      %v472 = vpop.f32.mrb[0].mxu0
      %v473 = vadd.f32 0.0, %v472
      %v474 = vpop.f32.mrb[0].mxu0
      %v475 = vadd.f32 0.0, %v474
      %v476 = vpop.f32.mrb[0].mxu0
      %v477 = vadd.f32 0.0, %v476
      %v478 = vpop.f32.mrb[0].mxu0
      %v479 = vadd.f32 0.0, %v478
      %480 = vmatprep.mubr.bf16.mxu0 0
      %481 = vmatmul.mubr.bf16.gmra.mrb[0].mxu0 %v436
      %v482 = vpop.f32.mrb[0].mxu0
      %v483 = vadd.f32 0.0, %v482
      %v484 = vpop.f32.mrb[0].mxu0
      %v485 = vadd.f32 0.0, %v484
      %v486 = vpop.f32.mrb[0].mxu0
      %v487 = vadd.f32 0.0, %v486
      %v488 = vpop.f32.mrb[0].mxu0
      %v489 = vadd.f32 0.0, %v488
      %490 = vdwg.mxu0
      %491 = vmatprep.subr.bf16.mxu0 %v419
      %492 = vmatpush1.bf16.msra.mxu0 %v418
      %493 = vmatprep.subr.bf16.mxu0 %v423
      %494 = vmatpush1.bf16.msra.mxu0 %v422
      %495 = vmatprep.subr.bf16.mxu0 0
      %496 = vmatpush1.bf16.msra.mxu0 0
      %497 = vmatprep.subr.bf16.mxu0 0
      %498 = vmatpush1.bf16.msra.mxu0 0
      %499 = vmatprep.subr.bf16.mxu0 0
      %500 = vmatpush1.bf16.msra.mxu0 0
      %501 = vmatprep.subr.bf16.mxu0 0
      %502 = vmatpush1.bf16.msra.mxu0 0
      %503 = vmatprep.subr.bf16.mxu0 0
      %504 = vmatpush1.bf16.msra.mxu0 0
      %505 = vmatprep.subr.bf16.mxu0 0
      %506 = vmatpush1.bf16.msra.mxu0 0
      %507 = vmatprep.subr.bf16.mxu0 0
      %508 = vmatpush1.bf16.msra.mxu0 0
      %509 = vmatprep.subr.bf16.mxu0 0
      %510 = vmatpush1.bf16.msra.mxu0 0
      %511 = vmatprep.subr.bf16.mxu0 0
      %512 = vmatpush1.bf16.msra.mxu0 0
      %513 = vmatprep.subr.bf16.mxu0 0
      %514 = vmatpush1.bf16.msra.mxu0 0
      %515 = vmatprep.subr.bf16.mxu0 0
      %516 = vmatpush1.bf16.msra.mxu0 0
      %517 = vmatprep.subr.bf16.mxu0 0
      %518 = vmatpush1.bf16.msra.mxu0 0
      %519 = vmatprep.subr.bf16.mxu0 0
      %520 = vmatpush1.bf16.msra.mxu0 0
      %521 = vmatprep.subr.bf16.mxu0 0
      %522 = vmatpush1.bf16.msra.mxu0 0
      %523 = vmatprep.mubr.bf16.mxu0 0
      %524 = vmatmul.mubr.bf16.gmra.mrb[0].mxu0 %v433
      %v525 = vpop.f32.mrb[0].mxu0
      %v526 = vadd.f32 0.0, %v525
      %v527 = vpop.f32.mrb[0].mxu0
      %v528 = vadd.f32 0.0, %v527
      %v529 = vpop.f32.mrb[0].mxu0
      %v530 = vadd.f32 0.0, %v529
      %v531 = vpop.f32.mrb[0].mxu0
      %v532 = vadd.f32 0.0, %v531
      %533 = vmatprep.mubr.bf16.mxu0 0
      %534 = vmatmul.mubr.bf16.gmra.mrb[0].mxu0 %v436
      %v535 = vpop.f32.mrb[0].mxu0
      %v536 = vadd.f32 0.0, %v535
      %v537 = vpop.f32.mrb[0].mxu0
      %v538 = vadd.f32 0.0, %v537
      %v539 = vpop.f32.mrb[0].mxu0
      %v540 = vadd.f32 0.0, %v539
      %v541 = vpop.f32.mrb[0].mxu0
      %v542 = vadd.f32 0.0, %v541
      %543 = vdwg.mxu0
      %v544 = vadd.f32 %v473, 0.0
      %v545 = vadd.f32 %v475, 0.0
      %v546 = vadd.f32 %v526, 0.0
      %v551 = vrot.slane %v473, 3
      %v552 = vrot.slane %v475, 3
      %v553 = vrot.slane %v526, 3
      %v554 = vrot.slane %v528, 3
      %555 = vrot.lane.b32.xlu0 %v551, 127
      %v556 = vpop.permute.xlu0 %555
      %557 = vrot.lane.b32.xlu0 %v552, 127
      %v558 = vpop.permute.xlu0 %557
      %559 = vrot.lane.b32.xlu0 %v553, 127
      %v560 = vpop.permute.xlu0 %559
      %561 = vrot.lane.b32.xlu0 %v554, 127
      %v562 = vpop.permute.xlu0 %561
      %vm563 = vcmask 1039360
      %v564 = vsel %vm563, %v556, %v558
      %v565 = vsel %vm563, %v558, %v560
      %v566 = vsel %vm563, %v560, %v562
      %v570 = vadd.f32 %v544, %v564
      %v571 = vadd.f32 %v545, %v565
      %v572 = vadd.f32 %v546, %v566
      %vm577 = vcmask 1041408
      %v578 = vrot.slane %v473, 6
      %v579 = vrot.slane %v477, 6
      %v580 = vsel %vm577, %v578, %v579
      %v581 = vrot.slane %v475, 6
      %v582 = vrot.slane %v479, 6
      %v583 = vsel %vm577, %v581, %v582
      %v584 = vrot.slane %v526, 6
      %v585 = vrot.slane %v530, 6
      %v586 = vsel %vm577, %v584, %v585
      %v587 = vrot.slane %v528, 6
      %v588 = vrot.slane %v532, 6
      %v589 = vsel %vm577, %v587, %v588
      %590 = vrot.lane.b32.xlu0 %v580, 126
      %v591 = vpop.permute.xlu0 %590
      %592 = vrot.lane.b32.xlu0 %v583, 126
      %v593 = vpop.permute.xlu0 %592
      %594 = vrot.lane.b32.xlu0 %v586, 126
      %v595 = vpop.permute.xlu0 %594
      %596 = vrot.lane.b32.xlu0 %v589, 126
      %v597 = vpop.permute.xlu0 %596
      %vm598 = vcmask 1031168
      %v599 = vsel %vm598, %v591, %v593
      %v600 = vsel %vm598, %v593, %v595
      %v601 = vsel %vm598, %v595, %v597
      %v605 = vadd.f32 %v570, %v599
      %v606 = vadd.f32 %v571, %v600
      %v607 = vadd.f32 %v572, %v601
      %v608 = vrot.slane %v477, 1
      %v609 = vrot.slane %v479, 1
      %v610 = vrot.slane %v530, 1
      %v611 = vrot.slane %v532, 1
      %612 = vrot.lane.b32.xlu0 %v608, 110
      %v613 = vpop.permute.xlu0 %612
      %614 = vrot.lane.b32.xlu0 %v609, 110
      %v615 = vpop.permute.xlu0 %614
      %616 = vrot.lane.b32.xlu0 %v610, 110
      %v617 = vpop.permute.xlu0 %616
      %618 = vrot.lane.b32.xlu0 %v611, 110
      %v619 = vpop.permute.xlu0 %618
      %vm620 = vcmask 900096
      %v621 = vsel %vm620, %v613, %v615
      %v622 = vsel %vm620, %v615, %v617
      %v623 = vsel %vm620, %v617, %v619
      %v627 = vadd.f32 %v605, %v621
      %v628 = vadd.f32 %v606, %v622
      %v629 = vadd.f32 %v607, %v623
      %v630 = vrot.slane %v477, 4
      %v631 = vrot.slane %v479, 4
      %v632 = vrot.slane %v530, 4
      %v633 = vrot.slane %v532, 4
      %634 = vrot.lane.b32.xlu0 %v630, 109
      %v635 = vpop.permute.xlu0 %634
      %636 = vrot.lane.b32.xlu0 %v631, 109
      %v637 = vpop.permute.xlu0 %636
      %638 = vrot.lane.b32.xlu0 %v632, 109
      %v639 = vpop.permute.xlu0 %638
      %640 = vrot.lane.b32.xlu0 %v633, 109
      %v641 = vpop.permute.xlu0 %640
      %vm642 = vcmask 891904
      %v643 = vsel %vm642, %v635, %v637
      %v644 = vsel %vm642, %v637, %v639
      %v645 = vsel %vm642, %v639, %v641
      %v649 = vadd.f32 %v627, %v643
      %v650 = vadd.f32 %v628, %v644
      %v651 = vadd.f32 %v629, %v645
      %vm656 = vcmask 1040384
      %v657 = vrot.slane %v477, 7
      %v658 = vrot.slane %v483, 7
      %v659 = vsel %vm656, %v657, %v658
      %v660 = vrot.slane %v479, 7
      %v661 = vrot.slane %v485, 7
      %v662 = vsel %vm656, %v660, %v661
      %v663 = vrot.slane %v530, 7
      %v664 = vrot.slane %v536, 7
      %v665 = vsel %vm656, %v663, %v664
      %v666 = vrot.slane %v532, 7
      %v667 = vrot.slane %v538, 7
      %v668 = vsel %vm656, %v666, %v667
      %669 = vrot.lane.b32.xlu0 %v659, 108
      %v670 = vpop.permute.xlu0 %669
      %671 = vrot.lane.b32.xlu0 %v662, 108
      %v672 = vpop.permute.xlu0 %671
      %673 = vrot.lane.b32.xlu0 %v665, 108
      %v674 = vpop.permute.xlu0 %673
      %675 = vrot.lane.b32.xlu0 %v668, 108
      %v676 = vpop.permute.xlu0 %675
      %vm677 = vcmask 883712
      %v678 = vsel %vm677, %v670, %v672
      %v679 = vsel %vm677, %v672, %v674
      %v680 = vsel %vm677, %v674, %v676
      %v684 = vadd.f32 %v649, %v678
      %v685 = vadd.f32 %v650, %v679
      %v686 = vadd.f32 %v651, %v680
      %v687 = vrot.slane %v483, 2
      %v688 = vrot.slane %v485, 2
      %v689 = vrot.slane %v536, 2
      %v690 = vrot.slane %v538, 2
      %691 = vrot.lane.b32.xlu0 %v687, 92
      %v692 = vpop.permute.xlu0 %691
      %693 = vrot.lane.b32.xlu0 %v688, 92
      %v694 = vpop.permute.xlu0 %693
      %695 = vrot.lane.b32.xlu0 %v689, 92
      %v696 = vpop.permute.xlu0 %695
      %697 = vrot.lane.b32.xlu0 %v690, 92
      %v698 = vpop.permute.xlu0 %697
      %vm699 = vcmask 752640
      %v700 = vsel %vm699, %v692, %v694
      %v701 = vsel %vm699, %v694, %v696
      %v702 = vsel %vm699, %v696, %v698
      %v706 = vadd.f32 %v684, %v700
      %v707 = vadd.f32 %v685, %v701
      %v708 = vadd.f32 %v686, %v702
      %v709 = vrot.slane %v483, 5
      %v710 = vrot.slane %v485, 5
      %v711 = vrot.slane %v536, 5
      %v712 = vrot.slane %v538, 5
      %713 = vrot.lane.b32.xlu0 %v709, 91
      %v714 = vpop.permute.xlu0 %713
      %715 = vrot.lane.b32.xlu0 %v710, 91
      %v716 = vpop.permute.xlu0 %715
      %717 = vrot.lane.b32.xlu0 %v711, 91
      %v718 = vpop.permute.xlu0 %717
      %719 = vrot.lane.b32.xlu0 %v712, 91
      %v720 = vpop.permute.xlu0 %719
      %vm721 = vcmask 744448
      %v722 = vsel %vm721, %v714, %v716
      %v723 = vsel %vm721, %v716, %v718
      %v724 = vsel %vm721, %v718, %v720
      %v728 = vadd.f32 %v706, %v722
      %v729 = vadd.f32 %v707, %v723
      %v730 = vadd.f32 %v708, %v724
      %735 = vrot.lane.b32.xlu0 %v487, 90
      %v736 = vpop.permute.xlu0 %735
      %737 = vrot.lane.b32.xlu0 %v489, 90
      %v738 = vpop.permute.xlu0 %737
      %739 = vrot.lane.b32.xlu0 %v540, 90
      %v740 = vpop.permute.xlu0 %739
      %741 = vrot.lane.b32.xlu0 %v542, 90
      %v742 = vpop.permute.xlu0 %741
      %vm743 = vcmask 736256
      %v744 = vsel %vm743, %v736, %v738
      %v745 = vsel %vm743, %v738, %v740
      %v746 = vsel %vm743, %v740, %v742
      %v750 = vadd.f32 %v728, %v744
      %v751 = vadd.f32 %v729, %v745
      %v752 = vadd.f32 %v730, %v746
      %v753 = vld [vmem:[%s3] sm:$0x7]
      %755 = vset.pattern.permute.xlu0 0
      %756 = vperm.xlu0 %755, %v753
      %v757 = vpop.permute.xlu0 %756
      %v759 = vadd.f32 %v750, %v757
      %v760 = vadd.f32 %v751, %v757
      %v761 = vadd.f32 %v752, %v757
      %v762 = vlaneseq
      %v763 = vand.u32 %v762, 127
      %v764 = vadd.s32 %v763, 128
      %v765 = vadd.s32 %v763, 256
      %vm766 = vcmp.lt.s32.totalorder %v763, 288
      %vm767 = vcmp.lt.s32.totalorder %v764, 288
      %vm768 = vcmp.lt.s32.totalorder %v765, 288
      %vm769 = vcmp.lt.s32.totalorder %v763, 0
      %v770 = vsub.s32 0, %v763
      %v771 = vsel %vm769, %v770, %v763
      %v772 = vmul.u32.u64.compose %v771, 3817748708
      %v773 = vextract.low.u32 %v772
      %v774 = vextract.high.u32 %v772
      %v775 = vshrl.u32 %v774, 4
      %v776 = vmul.u32 %v775, 18
      %v777 = vsub.s32 %v771, %v776
      %v778 = vsub.s32 0, %v777
      %v779 = vsel %vm769, %v778, %v777
      %vm780 = vcmp.lt.s32.totalorder %v764, 0
      %v781 = vsub.s32 0, %v764
      %v782 = vsel %vm780, %v781, %v764
      %v783 = vmul.u32.u64.compose %v782, 3817748708
      %v784 = vextract.low.u32 %v783
      %v785 = vextract.high.u32 %v783
      %v786 = vshrl.u32 %v785, 4
      %v787 = vmul.u32 %v786, 18
      %v788 = vsub.s32 %v782, %v787
      %v789 = vsub.s32 0, %v788
      %v790 = vsel %vm780, %v789, %v788
      %vm791 = vcmp.lt.s32.totalorder %v765, 0
      %v792 = vsub.s32 0, %v765
      %v793 = vsel %vm791, %v792, %v765
      %v794 = vmul.u32.u64.compose %v793, 3817748708
      %v795 = vextract.low.u32 %v794
      %v796 = vextract.high.u32 %v794
      %v797 = vshrl.u32 %v796, 4
      %v798 = vmul.u32 %v797, 18
      %v799 = vsub.s32 %v793, %v798
      %v800 = vsub.s32 0, %v799
      %v801 = vsel %vm791, %v800, %v799
      %vm802 = vcmp.ne.s32.totalorder %v779, 0
      %vm803 = vcmp.ne.s32.totalorder %v790, 0
      %vm804 = vcmp.ne.s32.totalorder %v801, 0
      %vm805 = vcmp.lt.s32.totalorder %v779, 0
      %vm806 = vcmp.lt.s32.totalorder %v790, 0
      %vm807 = vcmp.lt.s32.totalorder %v801, 0
      %vm808 = vmand %vm805, %vm802
      %vm809 = vmand %vm806, %vm803
      %vm810 = vmand %vm807, %vm804
      %v811 = vadd.s32 %v779, 18
      %v812 = vadd.s32 %v790, 18
      %v813 = vadd.s32 %v801, 18
      %v814 = vsel %vm808, %v811, %v779
      %v815 = vsel %vm809, %v812, %v790
      %v816 = vsel %vm810, %v813, %v801
      %vm817 = vcmp.lt.s32.totalorder %v814, 16
      %vm818 = vcmp.lt.s32.totalorder %v815, 16
      %vm819 = vcmp.lt.s32.totalorder %v816, 16
      %vm820 = vmand %vm766, %vm817
      %vm821 = vmand %vm767, %vm818
      %vm822 = vmand %vm768, %vm819
      %v823 = vsel %vm820, 1, 0
      %v824 = vsel %vm821, 1, 0
      %v825 = vsel %vm822, 1, 0
      %v826 = vcvt.s32.f32 %v823
      %v827 = vcvt.s32.f32 %v824
      %v828 = vcvt.s32.f32 %v825
      %v829 = vmul.f32 %v759, %v826
      %v830 = vmul.f32 %v760, %v827
      %v831 = vmul.f32 %v761, %v828
      %vm832 = vcmask 1042432
      %v833 = vsel %vm832, %v829, 0.0
      %v834 = vsel %vm832, %v830, 0.0
      %v835 = vadd.f32 %v833, %v834
      %v836 = vsel %vm832, %v831, 0.0
      %v837 = vadd.f32 %v835, %v836
      %838 = vadd.xlane.f32.xlu0 %v837
      %v839 = vpop.xlane.xlu0 %838
      %v840 = vmul.f32 %v759, %v759
      %v841 = vmul.f32 %v760, %v760
      %v842 = vmul.f32 %v761, %v761
      %v843 = vmul.f32 %v840, %v826
      %v844 = vmul.f32 %v841, %v827
      %v845 = vmul.f32 %v842, %v828
      %v846 = vsel %vm832, %v843, 0.0
      %v847 = vsel %vm832, %v844, 0.0
      %v848 = vadd.f32 %v846, %v847
      %v849 = vsel %vm832, %v845, 0.0
      %v850 = vadd.f32 %v848, %v849
      %851 = vadd.xlane.f32.xlu0 %v850
      %v852 = vpop.xlane.xlu0 %851
      %v853 = vmul.f32 %v839, 0.00390625
      %v854 = vmul.f32 %v853, 256.0
      %v855 = vmul.f32 %v854, %v853
      %v856 = vsub.f32 %v852, %v855
      %v857 = vmul.f32 %v856, 0.003921569
      %v858 = vmax.f32 %v857, 0.0
      %v859 = vrsqrt.pop %v858
      %v860 = vmul.f32 %v858, %v859
      %vm861 = vcmp.eq.f32.partialorder %v858, inf
      %v862 = vsel %vm861, %v858, %v860
      %vm863 = vcmp.eq.f32.partialorder %v858, 0.0
      %v864 = vand.u32 %v858, 2147483648
      %v865 = vsel %vm863, %v864, %v862
      %v866 = vadd.f32 %v865, 1e-06
      %v867 = vrcp.pop %v866
      %v869 = vrot.slane %v867, 5
      %v871 = vmul.f32 %v369, %v869
      %v873 = vrot.slane %v871, 3
      %v875 = vmul.f32 %v853, %v873
      %v876 = vsub.f32 %v369, %v875
      %877 = vset.pattern.permute.xlu0 0
      %878 = vperm.xlu0 %877, %v871
      %v879 = vpop.permute.xlu0 %878
      %v880 = vrot.slane %v879, 3
      %v882 = vmul.f32 %v759, %v880
      %v883 = vmul.f32 %v760, %v880
      %v884 = vmul.f32 %v761, %v880
      %886 = vset.pattern.permute.xlu0 0
      %887 = vperm.xlu0 %886, %v876
      %v888 = vpop.permute.xlu0 %887
      %v890 = vadd.f32 %v882, %v888
      %v891 = vadd.f32 %v883, %v888
      %v892 = vadd.f32 %v884, %v888
      %v895 = vcombine.low %v890, %v891
      %897 = vst [vmem:[%s271] sm:$0x77] %v895
      %898 = vst [vmem:[%s271 + $0x8] sm:$0x7] %v892
      %p899 = scmp.lt.s32.totalorder %s17, 1
      %s900 = scalar_select %p899, %s17, 1
      %s901 = smul.addr %s900, 3
      %s902 = smul.addr %s901, 4
      %s903 = scalar_lea.vmem %s6, %s902
      // Predicated region
      $region45: #{rgb_block_forward.1} parent=43 // pred_check
        %p904 = pneg %p171
      $region46: #{rgb_block_forward.1} parent=43 // pred_check_branch
        %906 = sbr.rel (%p904) target = $region48
      $region47: #{rgb_block_forward.1} parent=43 // pred_region
        _
      $region48: #{rgb_block_forward.1} parent=43 // pred_fallthru
        _
    $region44: #{rgb_block_forward.1} parent=5 // pred_fallthru
      _
    %p907 = scmp.le.s32.totalorder 2, %s12
    // Predicated region
    $region49: #{rgb_block_forward.1} parent=5 // pred_check
      %p908 = pneg %p907
    $region50: #{rgb_block_forward.1} parent=5 // pred_check_branch
      %910 = sbr.rel (%p908) target = $region52
    $region51: #{rgb_block_forward.1} parent=5 // pred_region
      %s911 = ssub.s32 %s12, 2
      // Predicated region
      $region53: #{rgb_block_forward.1} parent=51 // pred_check
        %p912 = pneg %p177
      $region54: #{rgb_block_forward.1} parent=51 // pred_check_branch
        %914 = sbr.rel (%p912) target = $region56
      $region55: #{rgb_block_forward.1} parent=51 // pred_region
        %p915 = scmp.lt.s32.totalorder %s18, 1
        %s916 = scalar_select %p915, %s18, 1
        %s917 = smul.addr %s916, 3
        %s918 = smul.addr %s917, 4
        %s919 = scalar_lea.vmem %s6, %s918
      $region56: #{rgb_block_forward.1} parent=51 // pred_fallthru
        _
    $region52: #{rgb_block_forward.1} parent=5 // pred_fallthru
      _
  $region6: #{rgb_block_forward.1} parent=0 // loop_footer
    %s16 = sadd.s32 1, %s12
  $region7: #{rgb_block_forward.1} parent=0 // loop_footer_branch
    %11 = sbr.rel target = $region3
  $region8: #{rgb_block_forward.1} parent=0 // loop_exit
    _

</llo_original>
